<compile_context>
chip_gen: v5e
topology: v5e:2x2
jax: 0.10.0
libtpu: 0.0.40
codegen_flags: <defaults>
</compile_context>

<pallas_src>
import jax
import jax.numpy as jnp
from jax.experimental import pallas as pl
from jax.experimental.pallas import tpu as pltpu


# --------------------------------------------------------------------------- #
# Kernel
# --------------------------------------------------------------------------- #
def _make_st_softmax_kernel(n_real):
    """Build the kernel closed over the real category count N."""

    def kernel(logits_ref, u_ref, st_ref, probs_ref):
        x = logits_ref[...].astype(jnp.float32)              # [tb, N]

        # Numerically-stable softmax along the lane axis.
        m = jnp.max(x, axis=-1, keepdims=True)               # [tb, 1]
        e = jnp.exp(x - m)                                    # [tb, N]
        denom = jnp.sum(e, axis=-1, keepdims=True)            # [tb, 1]
        inv = pl.reciprocal(denom, approx=False)              # exact; EUP path
        probs = e * inv                                        # [tb, N]

        # Inverse-CDF categorical sampling.
        # cumsum is offloaded to the (otherwise idle) MXU:
        #   cum_e[:, j] = sum_{k <= j} e[:, k] = e @ T,  T[k, j] = (k <= j)
        row = jax.lax.broadcasted_iota(jnp.int32, (n_real, n_real), 0)
        col2 = jax.lax.broadcasted_iota(jnp.int32, (n_real, n_real), 1)
        tri = (row <= col2).astype(jnp.float32)               # [N, N] constant
        cum_e = jnp.dot(e, tri, preferred_element_type=jnp.float32)  # [tb, N]

        # Compare in un-normalized space: u >= cum_probs[j] <=> u*denom >= cum_e[j]
        u = u_ref[...].astype(jnp.float32)                     # [tb, 1]
        thresh = u * denom                                     # [tb, 1]
        idx = jnp.minimum(
            jnp.sum((thresh >= cum_e).astype(jnp.int32), axis=-1, keepdims=True),
            n_real - 1,
        )                                                      # [tb, 1]
        col = jax.lax.broadcasted_iota(jnp.int32, x.shape, 1)  # [tb, N]
        one_hot = (col == idx).astype(jnp.float32)

        probs_ref[...] = probs.astype(probs_ref.dtype)
        # Forward value of ((one_hot - probs).detach() + probs) equals one_hot;
        # the straight-through gradient is supplied via custom_vjp below.
        st_ref[...] = one_hot.astype(st_ref.dtype)

    return kernel


# --------------------------------------------------------------------------- #
# Tiling / VMEM sizing
# --------------------------------------------------------------------------- #
def _vmem_capacity_bytes():
    try:
        info = pltpu.get_tpu_info()
        cap = getattr(info, "vmem_capacity_bytes", None)
        if cap:
            return int(cap)
    except Exception:
        pass
    return 64 << 20  # conservative fallback (v7x per-core physical VMEM)


def _pick_block_rows(B, N, dtype_bytes, vmem_cap):
    """Row-tile size: as large as a conservative per-generation VMEM budget
    allows, but small enough to leave >= ~8 grid steps so the grid axis stays
    pipelined and (on v7x) can be split across both TensorCores."""
    # Sublane alignment: 8 rows for 4-byte, 16 for 2-byte, 32 for 1-byte dtypes.
    sub = 8 * max(1, 4 // dtype_bytes)
    if B <= sub:
        return B                      # single full-dim block for tiny batches
    # Sub-128 last dims still occupy full (8,128) vregs in VMEM.
    lanes = ((N + 127) // 128) * 128
    # 1 input + 2 outputs, double-buffered, plus ~8 f32 temporaries per element.
    bytes_per_row = lanes * (2 * 3 * dtype_bytes + 8 * 4)
    budget = min(vmem_cap // 6, 16 << 20)         # safe on v7x's 64 MiB VMEM
    tb_budget = max(sub, budget // max(bytes_per_row, 1))
    # Aim for >= 8 grid steps (megacore sharding + pipelining) when B allows.
    tb_steps = -(-B // 8)
    tb = max(sub, min(tb_budget, tb_steps))
    return int((tb // sub) * sub)


# --------------------------------------------------------------------------- #
# pallas_call wrapper (+ straight-through custom_vjp)
# --------------------------------------------------------------------------- #
def _st_softmax_impl(logits, u):
    B, N = logits.shape
    dtype_bytes = jnp.dtype(logits.dtype).itemsize
    vmem_cap = _vmem_capacity_bytes()
    tb = _pick_block_rows(B, N, dtype_bytes, vmem_cap)
    n_blocks = pl.cdiv(B, tb)        # ragged last block handled by Pallas

    kernel = _make_st_softmax_kernel(N)

    st, probs = pl.pallas_call(
        kernel,
        out_shape=(
            jax.ShapeDtypeStruct((B, N), logits.dtype),
            jax.ShapeDtypeStruct((B, N), logits.dtype),
        ),
        grid=(n_blocks,),
        in_specs=[
            pl.BlockSpec((tb, N), lambda i: (i, 0)),   # last dim = full N (legal)
            pl.BlockSpec((tb, 1), lambda i: (i, 0)),
        ],
        out_specs=(
            pl.BlockSpec((tb, N), lambda i: (i, 0)),
            pl.BlockSpec((tb, N), lambda i: (i, 0)),
        ),
        compiler_params=pltpu.CompilerParams(
            # Row blocks are fully independent (randomness arrives as data),
            # so the grid axis can be sharded across v7x's two TensorCores.
            dimension_semantics=("parallel",),
            vmem_limit_bytes=int(min(vmem_cap // 2, 64 << 20)),
        ),
    )(logits, u)
    return st, probs


@jax.custom_vjp
def _st_softmax(logits, u):
    return _st_softmax_impl(logits, u)


def _st_softmax_fwd(logits, u):
    st, probs = _st_softmax_impl(logits, u)
    return (st, probs), (probs, u)


def _st_softmax_bwd(res, cotangents):
    probs, u = res
    g_st, g_probs = cotangents
    # Straight-through: d st/d logits == d probs/d logits (softmax Jacobian).
    g = (g_st + g_probs).astype(jnp.float32)
    p = probs.astype(jnp.float32)
    grad_logits = p * (g - jnp.sum(g * p, axis=-1, keepdims=True))
    return grad_logits.astype(probs.dtype), jnp.zeros_like(u)


_st_softmax.defvjp(_st_softmax_fwd, _st_softmax_bwd)


def straight_through_softmax(logits, seed=0):
    """logits: [B, N]. Returns (straight_through_one_hot, probs)."""
    B, _ = logits.shape
    # One uniform per row (categorical distribution over probs matches
    # torch.multinomial; the torch RNG stream itself cannot be matched).
    u = jax.random.uniform(jax.random.PRNGKey(seed), (B, 1), dtype=jnp.float32)
    return _st_softmax(logits, u)


# --------------------------------------------------------------------------- #
# Self-test
# --------------------------------------------------------------------------- #
if __name__ == "__main__":
    key = jax.random.PRNGKey(0)

    def check(B, N, seed):
        logits = jax.random.normal(jax.random.fold_in(key, B * 1000 + N),
                                   (B, N), dtype=jnp.float32)
        st, probs = straight_through_softmax(logits, seed=seed)
        st, probs = jax.block_until_ready((st, probs))

        ref_probs = jax.nn.softmax(logits, axis=-1)
        assert jnp.allclose(probs, ref_probs, atol=1e-5), "probs mismatch"

        num_hot = jnp.sum(st > 0.5, axis=-1)
        assert bool(jnp.all(num_hot == 1)), "each row must sample exactly one index"
        assert jnp.allclose(jnp.sum(st, axis=-1), 1.0, atol=1e-5), "rows must sum to 1"
        assert bool(jnp.all(jnp.where(st <= 0.5, st, 0.0) == 0.0)), \
            "non-sampled entries must be exactly zero"

    # Primary shape implied by the module (small categorical head).
    check(B=8, N=32, seed=0)
    # Ragged batch (exercises cdiv grid / padded last block handling).
    check(B=20, N=32, seed=1)

    print("KERNEL_OK")
</pallas_src>

<mosaic_0001>
module attributes {stable_mosaic.version = 11 : i64} {
  func.func @kernel(%arg0: i32, %arg1: memref<8x32xf32, #tpu.memory_space<vmem>>, %arg2: memref<8x1xf32, #tpu.memory_space<vmem>>, %arg3: memref<8x32xf32, #tpu.memory_space<vmem>>, %arg4: memref<8x32xf32, #tpu.memory_space<vmem>>) attributes {dimension_semantics = [#tpu.dimension_semantics<parallel>], iteration_bounds = array<i64: 1>, scalar_prefetch = 0 : i64, scratch_operands = 0 : i64, tpu.core_type = #tpu.core_type<tc>, window_params = [{transform_indices = @transform_0, window_bounds = array<i64: 8, 32>}, {transform_indices = @transform_1, window_bounds = array<i64: 8, 1>}, {transform_indices = @transform_2, window_bounds = array<i64: 8, 32>}, {transform_indices = @transform_3, window_bounds = array<i64: 8, 32>}]} {
    %c0 = arith.constant 0 : index
    %c0_0 = arith.constant 0 : index
    %0 = vector.load %arg1[%c0, %c0_0] : memref<8x32xf32, #tpu.memory_space<vmem>>, vector<8x32xf32>
    %cst = arith.constant dense<0xFF800000> : vector<8xf32>
    %1 = vector.multi_reduction <maximumf>, %0, %cst [1] : vector<8x32xf32> to vector<8xf32>
    %2 = vector.shape_cast %1 : vector<8xf32> to vector<8x1xf32>
    %3 = vector.broadcast %2 : vector<8x1xf32> to vector<8x32xf32>
    %4 = arith.subf %0, %3 : vector<8x32xf32>
    %5 = math.exp %4 : vector<8x32xf32>
    %cst_1 = arith.constant dense<0.000000e+00> : vector<8xf32>
    %6 = vector.multi_reduction <add>, %5, %cst_1 [1] : vector<8x32xf32> to vector<8xf32>
    %7 = vector.shape_cast %6 : vector<8xf32> to vector<8x1xf32>
    %8 = tpu.reciprocal %7 : vector<8x1xf32> -> vector<8x1xf32>
    %9 = vector.broadcast %8 : vector<8x1xf32> to vector<8x32xf32>
    %10 = arith.mulf %5, %9 : vector<8x32xf32>
    %11 = tpu.iota {dimensions = array<i32: 0>} : vector<32x32xi32>
    %12 = tpu.iota {dimensions = array<i32: 1>} : vector<32x32xi32>
    %13 = arith.cmpi sle, %11, %12 : vector<32x32xi32>
    %14 = arith.extui %13 : vector<32x32xi1> to vector<32x32xi32>
    %15 = arith.sitofp %14 : vector<32x32xi32> to vector<32x32xf32>
    %cst_2 = arith.constant dense<0.000000e+00> : vector<8x32xf32>
    %16 = tpu.matmul %5, %15, %cst_2 {dimension_numbers = #tpu.dot_dimension_numbers<[1], [0], [0], [1], [0, 0, 1, 1], [], []>} : vector<8x32xf32>, vector<32x32xf32>, vector<8x32xf32> -> vector<8x32xf32>
    %c0_3 = arith.constant 0 : index
    %c0_4 = arith.constant 0 : index
    %17 = vector.load %arg2[%c0_3, %c0_4] : memref<8x1xf32, #tpu.memory_space<vmem>>, vector<8x1xf32>
    %18 = arith.mulf %17, %7 : vector<8x1xf32>
    %19 = vector.broadcast %18 : vector<8x1xf32> to vector<8x32xf32>
    %20 = arith.cmpf oge, %19, %16 : vector<8x32xf32>
    %21 = arith.extui %20 : vector<8x32xi1> to vector<8x32xi32>
    %cst_5 = arith.constant dense<0> : vector<8xi32>
    %22 = vector.multi_reduction <add>, %21, %cst_5 [1] : vector<8x32xi32> to vector<8xi32>
    %23 = vector.shape_cast %22 : vector<8xi32> to vector<8x1xi32>
    %c31_i32 = arith.constant 31 : i32
    %24 = vector.broadcast %c31_i32 : i32 to vector<8x1xi32>
    %25 = arith.minsi %23, %24 : vector<8x1xi32>
    %26 = tpu.iota {dimensions = array<i32: 1>} : vector<8x32xi32>
    %27 = vector.broadcast %25 : vector<8x1xi32> to vector<8x32xi32>
    %28 = arith.cmpi eq, %26, %27 : vector<8x32xi32>
    %29 = arith.extui %28 : vector<8x32xi1> to vector<8x32xi32>
    %30 = arith.sitofp %29 : vector<8x32xi32> to vector<8x32xf32>
    %c0_6 = arith.constant 0 : index
    %c0_7 = arith.constant 0 : index
    %31 = vector.load %arg4[%c0_6, %c0_7] : memref<8x32xf32, #tpu.memory_space<vmem>>, vector<8x32xf32>
    tpu.vector_store %arg4[%c0_6, %c0_7], %10 {strides = array<i32>} : memref<8x32xf32, #tpu.memory_space<vmem>>, vector<8x32xf32>,
    %c0_8 = arith.constant 0 : index
    %c0_9 = arith.constant 0 : index
    %32 = vector.load %arg3[%c0_8, %c0_9] : memref<8x32xf32, #tpu.memory_space<vmem>>, vector<8x32xf32>
    tpu.vector_store %arg3[%c0_8, %c0_9], %30 {strides = array<i32>} : memref<8x32xf32, #tpu.memory_space<vmem>>, vector<8x32xf32>,
    return
  }
  func.func @transform_0(%arg0: i32) -> (i32, i32) {
    %c0_i32 = arith.constant 0 : i32
    %c0_i32_0 = arith.constant 0 : i32
    return %arg0, %c0_i32 : i32, i32
  }
  func.func @transform_1(%arg0: i32) -> (i32, i32) {
    %c0_i32 = arith.constant 0 : i32
    %c0_i32_0 = arith.constant 0 : i32
    return %arg0, %c0_i32 : i32, i32
  }
  func.func @transform_2(%arg0: i32) -> (i32, i32) {
    %c0_i32 = arith.constant 0 : i32
    %c0_i32_0 = arith.constant 0 : i32
    return %arg0, %c0_i32 : i32, i32
  }
  func.func @transform_3(%arg0: i32) -> (i32, i32) {
    %c0_i32 = arith.constant 0 : i32
    %c0_i32_0 = arith.constant 0 : i32
    return %arg0, %c0_i32 : i32, i32
  }
}

</mosaic_0001>

<llo_original>
// kernel: tpu_custom_call.1
$region0: #{tpu_custom_call.1}
  #allocation0 [shape = 'u32[]', space=smem, size = 0x4, offset = 0x4, fixed_abs, tag = 'smem constant byte address 0x4 - core index']
  #allocation1 [shape = 'u32[72,128]{1,0:T(1,128)}', space=vmem, size = 0x9000, scoped, tag = 'internal scratch']
  %s0 = inlined_call_operand.vmem [shape: f32[8,32], index: 0, kind: input, shape index: {}]
  %s1 = inlined_call_operand.vmem [shape: f32[8,1], index: 1, kind: input, shape index: {}]
  %s2 = inlined_call_operand.hbm [shape: f32[8,32], index: 2, kind: output, shape index: {0}]
  %s3 = inlined_call_operand.hbm [shape: f32[8,32], index: 3, kind: output, shape index: {1}]
  %4 = xla_tuple %s2, %s3
  %s5 = sld [smem:[#allocation0]]
  $region26: #{tpu_custom_call.1} parent=0
    _
  %s7 = ssub.s32 1, %s5
  %s8 = scalar_select 0, %s7, %s5
  $region1: #{tpu_custom_call.1} parent=0
    #allocation2 [shape = 'u8[4096]{0}', space=vmem, size = 0x1000, scoped, tag = 'output window, operand 0, single buffered']
    #allocation3 [shape = 's32[1]{0}', space=sflag, size = 0x4, scoped, tag = 'scoped memory for tpu_custom_call.1']
    #allocation4 [shape = 'u8[4096]{0}', space=vmem, size = 0x1000, scoped, tag = 'output window, operand 1, single buffered']
    #allocation5 [shape = 's32[1]{0}', space=sflag, size = 0x4, scoped, tag = 'scoped memory for tpu_custom_call.1']
    %9 = vsyncpa [#allocation3], 0
    %10 = vsyncpa [#allocation5], 0
    // Predicated region
    $region2: #{tpu_custom_call.1} parent=1 // pred_check
      _
    $region3: #{tpu_custom_call.1} parent=1 // pred_check_branch
      %12 = sbr.rel (0) target = $region5
    $region4: #{tpu_custom_call.1} parent=1 // pred_region
      _
    $region5: #{tpu_custom_call.1} parent=1 // pred_fallthru
      _
    // Predicated region
    $region6: #{tpu_custom_call.1} parent=1 // pred_check
      _
    $region7: #{tpu_custom_call.1} parent=1 // pred_check_branch
      %14 = sbr.rel (0) target = $region9
    $region8: #{tpu_custom_call.1} parent=1 // pred_region
      _
    $region9: #{tpu_custom_call.1} parent=1 // pred_fallthru
      _
    %v15 = vld [vmem:[%s0] sm:$0xff]
    %vm16 = vcmask 261120
    %v17 = vsel %vm16, %v15, -inf
    %18 = vmax.xlane.f32.xlu0 %v17
    %v19 = vpop.xlane.xlu0 %18
    %v20 = vsub.f32 %v15, %v19
    %v21 = vmul.f32 %v20, 1.442695
    %v22 = vpow.pop %v21
    %v23 = vsel %vm16, %v22, 0.0
    %24 = vadd.xlane.f32.xlu0 %v23
    %v25 = vpop.xlane.xlu0 %24
    %v26 = vrcp.pop %v25
    %v27 = vmul.f32 %v25, %v26
    %v28 = vsub.f32 1.0, %v27
    %v29 = vmul.f32 %v26, %v28
    %v30 = vadd.f32 %v26, %v29
    %vm31 = vweird.f32 %v25
    %vm32 = vweird.f32 %v26
    %vm33 = vmor %vm31, %vm32
    %v34 = vsel %vm33, %v26, %v30
    %v35 = vand.u32 2147483647, %v25
    %vm36 = vcmp.eq.f32.partialorder %v35, 8.507059e+37
    %v37 = vand.u32 %v25, 2147483648
    %v38 = vor.u32 1.1754944e-38, %v37
    %v39 = vsel %vm36, %v38, %v34
    %v40 = vmul.f32 %v22, %v39
    %v41 = vlaneseq
    %v42 = vshrl.u32 %v41, 7
    %v43 = vadd.s32 %v42, 8
    %v44 = vadd.s32 %v42, 16
    %v45 = vadd.s32 %v42, 24
    %v46 = vlaneseq
    %v47 = vand.u32 %v46, 127
    %vm48 = vcmp.le.s32.totalorder %v42, %v47
    %vm49 = vcmp.le.s32.totalorder %v43, %v47
    %vm50 = vcmp.le.s32.totalorder %v44, %v47
    %vm51 = vcmp.le.s32.totalorder %v45, %v47
    %v52 = vsel %vm48, 1, 0
    %v53 = vsel %vm49, 1, 0
    %v54 = vsel %vm50, 1, 0
    %v55 = vsel %vm51, 1, 0
    %v56 = vcvt.s32.f32 %v52
    %v57 = vcvt.s32.f32 %v53
    %v58 = vcvt.s32.f32 %v54
    %v59 = vcvt.s32.f32 %v55
    %v61 = vsel %vm16, %v22, 0
    %63 = vmatpush.msra.mxu0 0.0
    %64 = vmatpush.msra.mxu0 0.0
    %65 = vmatpush.msra.mxu0 0.0
    %66 = vmatpush.msra.mxu0 0.0
    %67 = vmatpush.msra.mxu0 0.0
    %68 = vmatpush.msra.mxu0 0.0
    %69 = vmatpush.msra.mxu0 0.0
    %70 = vmatpush.msra.mxu0 0.0
    %71 = vmatpush.msra.mxu0 0.0
    %72 = vmatpush.msra.mxu0 0.0
    %73 = vmatpush.msra.mxu0 0.0
    %74 = vmatpush.msra.mxu0 0.0
    %75 = vmatpush.msra.mxu0 %v59
    %76 = vmatpush.msra.mxu0 %v58
    %77 = vmatpush.msra.mxu0 %v57
    %78 = vmatpush.msra.mxu0 %v56
    %79 = vmatmul.f32.gmra.mxu0 %v61
    %v80 = vpop.f32.mrf.mxu0
    %v81 = vadd.f32 0.0, %v80
    %82 = vdwg.mxu0
    %v83 = vld [vmem:[%s1] sm:$0xff]
    %v84 = vmul.f32 %v83, %v25
    %86 = vset.pattern.permute.xlu0 0
    %87 = vperm.xlu0 %86, %v84
    %v88 = vpop.permute.xlu0 %87
    %vm90 = vcmp.ge.f32.partialorder %v88, %v81
    %v91 = vsel %vm90, 1, 0
    %v92 = vsel %vm16, %v91, 0
    %v93 = vand.u32 %v92, 65535
    %v94 = vshrl.u32 %v92, 16
    %v95 = vcvt.s32.f32 %v93
    %v96 = vcvt.s32.f32 %v94
    %97 = vadd.xlane.f32.xlu0 %v95
    %v98 = vpop.xlane.xlu0 %97
    %99 = vadd.xlane.f32.xlu0 %v96
    %v100 = vpop.xlane.xlu0 %99
    %v101 = vcvt.f32.s32 %v98
    %v102 = vcvt.f32.s32 %v100
    %v103 = vshll.u32 %v102, 16
    %v104 = vadd.s32 %v103, %v101
    %vm105 = vcmp.lt.s32.totalorder %v104, 31
    %v106 = vsel %vm105, %v104, 31
    %vm107 = vcmp.eq.s32.totalorder %v47, %v106
    %v108 = vsel %vm107, 1, 0
    %v109 = vcvt.s32.f32 %v108
    %110 = vst.msk [vmem:[#allocation4] sm:$0xff] %vm16, %v40
    %111 = vst.msk [vmem:[#allocation2] sm:$0xff] %vm16, %v109
    // Predicated region
    $region10: #{tpu_custom_call.1} parent=1 // pred_check
      _
    $region11: #{tpu_custom_call.1} parent=1 // pred_check_branch
      %113 = sbr.rel (0) target = $region13
    $region12: #{tpu_custom_call.1} parent=1 // pred_region
      %115 = vsyncadd [#allocation3], 0
      %s117 = sshll.u32 [#allocation2], 4
      %s118 = int_to_ptr.vmem [resolvable:$true] %s117
      %s119 = sshll.u32 %s2, 4
      %s120 = int_to_ptr.hbm [resolvable:$true] %s119
      %122 = dma.vmem_to_hbm [thread:$0]  %s118, 128, %s120, [#allocation3]
    $region13: #{tpu_custom_call.1} parent=1 // pred_fallthru
      _
    // Predicated region
    $region14: #{tpu_custom_call.1} parent=1 // pred_check
      _
    $region15: #{tpu_custom_call.1} parent=1 // pred_check_branch
      %124 = sbr.rel (0) target = $region17
    $region16: #{tpu_custom_call.1} parent=1 // pred_region
      %126 = vsyncadd [#allocation5], 0
      %s128 = sshll.u32 [#allocation4], 4
      %s129 = int_to_ptr.vmem [resolvable:$true] %s128
      %s130 = sshll.u32 %s3, 4
      %s131 = int_to_ptr.hbm [resolvable:$true] %s130
      %133 = dma.vmem_to_hbm [thread:$0]  %s129, 128, %s131, [#allocation5]
    $region17: #{tpu_custom_call.1} parent=1 // pred_fallthru
      _
    // Predicated region
    $region18: #{tpu_custom_call.1} parent=1 // pred_check
      _
    $region19: #{tpu_custom_call.1} parent=1 // pred_check_branch
      %135 = sbr.rel (0) target = $region21
    $region20: #{tpu_custom_call.1} parent=1 // pred_region
      %137 = dma.done [#allocation3], 128
    $region21: #{tpu_custom_call.1} parent=1 // pred_fallthru
      _
    // Predicated region
    $region22: #{tpu_custom_call.1} parent=1 // pred_check
      _
    $region23: #{tpu_custom_call.1} parent=1 // pred_check_branch
      %139 = sbr.rel (0) target = $region25
    $region24: #{tpu_custom_call.1} parent=1 // pred_region
      %141 = dma.done [#allocation5], 128
    $region25: #{tpu_custom_call.1} parent=1 // pred_fallthru
      _
    %142 = vsyncpa [#allocation3], 1
    %143 = vsyncpa [#allocation5], 1

</llo_original>
